<compile_context>
chip_gen: v5e
topology: v5e:2x2
jax: 0.10.0
libtpu: 0.0.40
codegen_flags: <defaults>
</compile_context>

<pallas_src>
import jax
import jax.numpy as jnp
from jax.experimental import pallas as pl
from jax.experimental.pallas import tpu as pltpu

LANE = 128


def classifier_kernel(x_ref, w1_ref, b1_ref, w2_ref, b2_ref, o_ref):
    # x_ref : (TB, C, HW)  f32  activation tile, HW on the lane axis
    # w1_ref: (C, F)       bf16 1x1-conv weight, pre-scaled by 1/HW
    # b1_ref: (1, F)       f32  1x1-conv bias
    # w2_ref: (F, NCp)     bf16 fc weight, lane-padded to a multiple of 128
    # b2_ref: (1, NCp)     f32  fc bias (lane-padded)
    # o_ref : (TB, NCp)    f32

    # Global average pool FIRST (exact: the 1x1 conv is linear per pixel and
    # its bias is spatially constant).  1/HW is folded into W1, so this is a
    # plain f32 sum over the lane axis (XLU reduce, off the MXU critical path).
    pooled = jnp.sum(x_ref[...], axis=-1)                              # (TB, C)

    # backbone projection to F=2048 features: bf16 operands, f32 accumulate,
    # f32 bias add.
    feats = (
        jnp.dot(pooled.astype(jnp.bfloat16), w1_ref[...],
                preferred_element_type=jnp.float32)
        + b1_ref[...]
    )                                                                   # (TB, F)

    # flatten(start_dim=1) is a no-op on (TB, F); fc written as one lane-dense
    # slab (unmasked vst along lanes).
    out = (
        jnp.dot(feats.astype(jnp.bfloat16), w2_ref[...],
                preferred_element_type=jnp.float32)
        + b2_ref[...]
    )                                                                   # (TB, NCp)
    o_ref[...] = out.astype(o_ref.dtype)


def prepare_classifier_params(w1, b1, w2, b2, hw):
    """One-time (init-time) parameter prep: cast to bf16, fold 1/HW into W1,
    lane-pad the fc weight/bias.  Keeps all of this off the per-call hot path."""
    C, F = w1.shape
    NC = w2.shape[1]
    NCp = pl.cdiv(NC, LANE) * LANE

    w1p = (w1.astype(jnp.float32) / float(hw)).astype(jnp.bfloat16)     # (C, F)
    b1p = b1.reshape(1, F).astype(jnp.float32)                          # (1, F)
    w2p = jnp.zeros((F, NCp), jnp.bfloat16).at[:, :NC].set(
        w2.astype(jnp.bfloat16))                                        # (F, NCp)
    b2p = jnp.zeros((1, NCp), jnp.float32).at[:, :NC].set(
        b2.reshape(1, NC).astype(jnp.float32))                          # (1, NCp)

    params = (w1p, b1p, w2p, b2p, NC)
    jax.block_until_ready((w1p, b1p, w2p, b2p))
    return params


def classifier_forward(x_nchw, params):
    """x_nchw: (B, C, H, W) float32.  Returns (B, num_class) float32."""
    w1p, b1p, w2p, b2p, num_class = params
    B, C, H, W = x_nchw.shape
    HW = H * W
    F = w1p.shape[1]
    NCp = w2p.shape[1]

    # NCHW -> (B, C, HW): free reshape (no transpose / extra HBM round-trip);
    # the spatial axis sits on the 128-lane dim for lane-dense loads.
    x = x_nchw.reshape(B, C, HW).astype(jnp.float32)

    # Whole batch in one grid step: B is tiny, weights stay resident, output
    # written once.  For large B, tile the batch with TB a multiple of 8 so the
    # (TB, NCp) store stays sublane-dense.
    TB = B
    grid = (pl.cdiv(B, TB),)

    cost = pl.CostEstimate(
        flops=2 * B * C * F + 2 * B * F * NCp,
        transcendentals=0,
        bytes_accessed=(x.size * 4 + w1p.size * 2 + b1p.size * 4
                        + w2p.size * 2 + b2p.size * 4 + B * NCp * 4),
    )

    out_padded = pl.pallas_call(
        classifier_kernel,
        out_shape=jax.ShapeDtypeStruct((B, NCp), jnp.float32),
        grid_spec=pltpu.PrefetchScalarGridSpec(
            num_scalar_prefetch=0,
            grid=grid,
            in_specs=[
                pl.BlockSpec((TB, C, HW), lambda i: (i, 0, 0)),
                pl.BlockSpec((C, F), lambda i: (0, 0)),
                pl.BlockSpec((1, F), lambda i: (0, 0)),
                pl.BlockSpec((F, NCp), lambda i: (0, 0)),
                pl.BlockSpec((1, NCp), lambda i: (0, 0)),
            ],
            out_specs=pl.BlockSpec((TB, NCp), lambda i: (i, 0)),
        ),
        compiler_params=pltpu.CompilerParams(
            dimension_semantics=("parallel",),
        ),
        cost_estimate=cost,
    )(x, w1p, b1p, w2p, b2p)

    # Strip the lane padding.
    return out_padded[:, :num_class]


def classifier_ref(x_nchw, w1, b1, w2, b2):
    """Plain-JAX f32 reference mirroring the PyTorch forward semantics
    (1x1 conv over every pixel, THEN global average pool, flatten, fc)."""
    B, C, H, W = x_nchw.shape
    x = jnp.transpose(x_nchw.reshape(B, C, H * W), (0, 2, 1))  # (B, HW, C)
    h = jnp.einsum("bpc,cf->bpf", x, w1) + b1                  # 1x1 conv
    pooled = jnp.mean(h, axis=1)                               # global avg pool
    flat = pooled.reshape(B, -1)                               # flatten(start_dim=1)
    return flat @ w2 + b2                                      # fc


if __name__ == "__main__":
    B, C, H, W = 2, 4, 16, 16
    FEAT = 2048
    NUM_CLASS = 10

    key = jax.random.PRNGKey(0)
    kx, kw1, kb1, kw2, kb2 = jax.random.split(key, 5)

    x = jax.random.normal(kx, (B, C, H, W), dtype=jnp.float32)
    # Deterministic synthetic parameters (no checkpoint load).
    w1 = jax.random.normal(kw1, (C, FEAT), dtype=jnp.float32) * 0.05
    b1 = jax.random.normal(kb1, (FEAT,), dtype=jnp.float32) * 0.01
    w2 = jax.random.normal(kw2, (FEAT, NUM_CLASS), dtype=jnp.float32) * 0.02
    b2 = jax.random.normal(kb2, (NUM_CLASS,), dtype=jnp.float32) * 0.01

    # Init-time prep (hoisted out of the per-call hot path).
    params = prepare_classifier_params(w1, b1, w2, b2, hw=H * W)

    out = classifier_forward(x, params)
    out = jax.block_until_ready(out)

    ref = classifier_ref(x, w1, b1, w2, b2)
    assert out.shape == (B, NUM_CLASS)
    assert jnp.allclose(out, ref, atol=1e-3, rtol=1e-3)

    print("KERNEL_OK")
</pallas_src>

<mosaic_0001>
module attributes {stable_mosaic.version = 11 : i64} {
  func.func @classifier_kernel(%arg0: i32, %arg1: memref<2x4x256xf32, #tpu.memory_space<vmem>>, %arg2: memref<4x2048xbf16, #tpu.memory_space<vmem>>, %arg3: memref<1x2048xf32, #tpu.memory_space<vmem>>, %arg4: memref<2048x128xbf16, #tpu.memory_space<vmem>>, %arg5: memref<1x128xf32, #tpu.memory_space<vmem>>, %arg6: memref<2x128xf32, #tpu.memory_space<vmem>>) attributes {dimension_semantics = [#tpu.dimension_semantics<parallel>], iteration_bounds = array<i64: 1>, scalar_prefetch = 0 : i64, scratch_operands = 0 : i64, tpu.core_type = #tpu.core_type<tc>, window_params = [{transform_indices = @transform_0, window_bounds = array<i64: 2, 4, 256>}, {pipeline_mode = #tpu.pipeline_mode<synchronous>, transform_indices = @transform_1, window_bounds = array<i64: 4, 2048>}, {pipeline_mode = #tpu.pipeline_mode<synchronous>, transform_indices = @transform_2, window_bounds = array<i64: 1, 2048>}, {pipeline_mode = #tpu.pipeline_mode<synchronous>, transform_indices = @transform_3, window_bounds = array<i64: 2048, 128>}, {pipeline_mode = #tpu.pipeline_mode<synchronous>, transform_indices = @transform_4, window_bounds = array<i64: 1, 128>}, {transform_indices = @transform_5, window_bounds = array<i64: 2, 128>}]} {
    %c0 = arith.constant 0 : index
    %c0_0 = arith.constant 0 : index
    %c0_1 = arith.constant 0 : index
    %0 = vector.load %arg1[%c0, %c0_0, %c0_1] : memref<2x4x256xf32, #tpu.memory_space<vmem>>, vector<2x4x256xf32>
    %cst = arith.constant dense<0.000000e+00> : vector<2x4xf32>
    %1 = vector.multi_reduction <add>, %0, %cst [2] : vector<2x4x256xf32> to vector<2x4xf32>
    %2 = arith.truncf %1 : vector<2x4xf32> to vector<2x4xbf16>
    %c0_2 = arith.constant 0 : index
    %c0_3 = arith.constant 0 : index
    %3 = vector.load %arg2[%c0_2, %c0_3] : memref<4x2048xbf16, #tpu.memory_space<vmem>>, vector<4x2048xbf16>
    %cst_4 = arith.constant dense<0.000000e+00> : vector<2x2048xf32>
    %4 = tpu.matmul %2, %3, %cst_4 {dimension_numbers = #tpu.dot_dimension_numbers<[1], [0], [0], [1], [0, 0, 1, 1], [], []>} : vector<2x4xbf16>, vector<4x2048xbf16>, vector<2x2048xf32> -> vector<2x2048xf32>
    %c0_5 = arith.constant 0 : index
    %c0_6 = arith.constant 0 : index
    %5 = vector.load %arg3[%c0_5, %c0_6] : memref<1x2048xf32, #tpu.memory_space<vmem>>, vector<1x2048xf32>
    %6 = vector.broadcast %5 : vector<1x2048xf32> to vector<2x2048xf32>
    %7 = arith.addf %4, %6 : vector<2x2048xf32>
    %8 = arith.truncf %7 : vector<2x2048xf32> to vector<2x2048xbf16>
    %c0_7 = arith.constant 0 : index
    %c0_8 = arith.constant 0 : index
    %9 = vector.load %arg4[%c0_7, %c0_8] : memref<2048x128xbf16, #tpu.memory_space<vmem>>, vector<2048x128xbf16>
    %cst_9 = arith.constant dense<0.000000e+00> : vector<2x128xf32>
    %10 = tpu.matmul %8, %9, %cst_9 {dimension_numbers = #tpu.dot_dimension_numbers<[1], [0], [0], [1], [0, 0, 1, 1], [], []>} : vector<2x2048xbf16>, vector<2048x128xbf16>, vector<2x128xf32> -> vector<2x128xf32>
    %c0_10 = arith.constant 0 : index
    %c0_11 = arith.constant 0 : index
    %11 = vector.load %arg5[%c0_10, %c0_11] : memref<1x128xf32, #tpu.memory_space<vmem>>, vector<1x128xf32>
    %12 = vector.broadcast %11 : vector<1x128xf32> to vector<2x128xf32>
    %13 = arith.addf %10, %12 : vector<2x128xf32>
    %c0_12 = arith.constant 0 : index
    %c0_13 = arith.constant 0 : index
    %14 = vector.load %arg6[%c0_12, %c0_13] : memref<2x128xf32, #tpu.memory_space<vmem>>, vector<2x128xf32>
    tpu.vector_store %arg6[%c0_12, %c0_13], %13 {strides = array<i32>} : memref<2x128xf32, #tpu.memory_space<vmem>>, vector<2x128xf32>,
    return
  }
  func.func @transform_0(%arg0: i32) -> (i32, i32, i32) {
    %c0_i32 = arith.constant 0 : i32
    %c0_i32_0 = arith.constant 0 : i32
    %c0_i32_1 = arith.constant 0 : i32
    return %arg0, %c0_i32, %c0_i32_0 : i32, i32, i32
  }
  func.func @transform_1(%arg0: i32) -> (i32, i32) {
    %c0_i32 = arith.constant 0 : i32
    %c0_i32_0 = arith.constant 0 : i32
    %c0_i32_1 = arith.constant 0 : i32
    return %c0_i32, %c0_i32_0 : i32, i32
  }
  func.func @transform_2(%arg0: i32) -> (i32, i32) {
    %c0_i32 = arith.constant 0 : i32
    %c0_i32_0 = arith.constant 0 : i32
    %c0_i32_1 = arith.constant 0 : i32
    return %c0_i32, %c0_i32_0 : i32, i32
  }
  func.func @transform_3(%arg0: i32) -> (i32, i32) {
    %c0_i32 = arith.constant 0 : i32
    %c0_i32_0 = arith.constant 0 : i32
    %c0_i32_1 = arith.constant 0 : i32
    return %c0_i32, %c0_i32_0 : i32, i32
  }
  func.func @transform_4(%arg0: i32) -> (i32, i32) {
    %c0_i32 = arith.constant 0 : i32
    %c0_i32_0 = arith.constant 0 : i32
    %c0_i32_1 = arith.constant 0 : i32
    return %c0_i32, %c0_i32_0 : i32, i32
  }
  func.func @transform_5(%arg0: i32) -> (i32, i32) {
    %c0_i32 = arith.constant 0 : i32
    %c0_i32_0 = arith.constant 0 : i32
    return %arg0, %c0_i32 : i32, i32
  }
}

</mosaic_0001>

<llo_original>
// kernel: tpu_custom_call.1
$region0: #{tpu_custom_call.1}
  #allocation0 [shape = 'u32[]', space=smem, size = 0x4, offset = 0x4, fixed_abs, tag = 'smem constant byte address 0x4 - core index']
  #allocation1 [shape = 'u32[72,128]{1,0:T(1,128)}', space=vmem, size = 0x9000, scoped, tag = 'internal scratch']
  %s0 = inlined_call_operand.hbm [shape: f32[2,4,256], index: 0, kind: input, shape index: {}]
  %s1 = inlined_call_operand.hbm [shape: bf16[4,2048], index: 1, kind: input, shape index: {}]
  %s2 = inlined_call_operand.hbm [shape: f32[1,2048], index: 2, kind: input, shape index: {}]
  %s3 = inlined_call_operand.hbm [shape: bf16[2048,128], index: 3, kind: input, shape index: {}]
  %s4 = inlined_call_operand.vmem [shape: f32[1,128], index: 4, kind: input, shape index: {}]
  %s5 = inlined_call_operand.hbm [shape: f32[2,128], index: 5, kind: output, shape index: {}]
  %s6 = sld [smem:[#allocation0]]
  $region46: #{tpu_custom_call.1} parent=0
    _
  %s8 = ssub.s32 1, %s6
  %s9 = scalar_select 0, %s8, %s6
  $region1: #{tpu_custom_call.1} parent=0
    #allocation2 [shape = 'u8[8192]{0}', space=vmem, size = 0x2000, scoped, tag = 'input window, operand 0, single buffered']
    #allocation3 [shape = 's32[1]{0}', space=sflag, size = 0x4, scoped, tag = 'scoped memory for tpu_custom_call.1']
    #allocation4 [shape = 's32[1]{0}', space=sflag, size = 0x4, scoped, tag = 'scoped memory for tpu_custom_call.1']
    #allocation5 [shape = 'u8[16384]{0}', space=vmem, size = 0x4000, scoped, tag = 'input window, operand 1, single buffered']
    #allocation6 [shape = 's32[1]{0}', space=sflag, size = 0x4, scoped, tag = 'scoped memory for tpu_custom_call.1']
    #allocation7 [shape = 'u8[8192]{0}', space=vmem, size = 0x2000, scoped, tag = 'input window, operand 2, single buffered']
    #allocation8 [shape = 'u8[524288]{0}', space=vmem, size = 0x80000, scoped, tag = 'input window, operand 3, single buffered']
    #allocation9 [shape = 's32[1]{0}', space=sflag, size = 0x4, scoped, tag = 'scoped memory for tpu_custom_call.1']
    #allocation10 [shape = 'u8[1024]{0}', space=vmem, size = 0x400, scoped, tag = 'output window, operand 0, single buffered']
    %10 = vsyncpa [#allocation3], 0
    %11 = vsyncpa [#allocation6], 0
    %12 = vsyncpa [#allocation9], 0
    %13 = vsyncpa [#allocation4], 0
    // Predicated region
    $region2: #{tpu_custom_call.1} parent=1 // pred_check
      _
    $region3: #{tpu_custom_call.1} parent=1 // pred_check_branch
      %15 = sbr.rel (0) target = $region5
    $region4: #{tpu_custom_call.1} parent=1 // pred_region
      %17 = vsyncadd [#allocation3], 0
      %s18 = sshll.u32 %s0, 4
      %s19 = int_to_ptr.hbm [resolvable:$true] %s18
      %s20 = sshll.u32 [#allocation2], 4
      %s21 = int_to_ptr.vmem [resolvable:$true] %s20
      %26 = dma.hbm_to_vmem [thread:$0]  %s19, 256, %s21, [#allocation3], 128, 128, 8
    $region5: #{tpu_custom_call.1} parent=1 // pred_fallthru
      _
    // Predicated region
    $region6: #{tpu_custom_call.1} parent=1 // pred_check
      _
    $region7: #{tpu_custom_call.1} parent=1 // pred_check_branch
      %28 = sbr.rel (0) target = $region9
    $region8: #{tpu_custom_call.1} parent=1 // pred_region
      %30 = vsyncadd [#allocation6], 0
      %s32 = sshll.u32 %s1, 4
      %s33 = int_to_ptr.hbm [resolvable:$true] %s32
      %s34 = sshll.u32 [#allocation5], 4
      %s35 = int_to_ptr.vmem [resolvable:$true] %s34
      %37 = dma.hbm_to_vmem [thread:$0]  %s33, 512, %s35, [#allocation6]
    $region9: #{tpu_custom_call.1} parent=1 // pred_fallthru
      _
    // Predicated region
    $region10: #{tpu_custom_call.1} parent=1 // pred_check
      _
    $region11: #{tpu_custom_call.1} parent=1 // pred_check_branch
      %39 = sbr.rel (0) target = $region13
    $region12: #{tpu_custom_call.1} parent=1 // pred_region
      %41 = vsyncadd [#allocation6], 0
      %s43 = sshll.u32 %s2, 4
      %s44 = int_to_ptr.hbm [resolvable:$true] %s43
      %s45 = sshll.u32 [#allocation7], 4
      %s46 = int_to_ptr.vmem [resolvable:$true] %s45
      %48 = dma.hbm_to_vmem [thread:$0]  %s44, 256, %s46, [#allocation6]
    $region13: #{tpu_custom_call.1} parent=1 // pred_fallthru
      _
    // Predicated region
    $region14: #{tpu_custom_call.1} parent=1 // pred_check
      _
    $region15: #{tpu_custom_call.1} parent=1 // pred_check_branch
      %50 = sbr.rel (0) target = $region17
    $region16: #{tpu_custom_call.1} parent=1 // pred_region
      %52 = vsyncadd [#allocation9], 0
      %s53 = sshll.u32 %s3, 4
      %s54 = int_to_ptr.hbm [resolvable:$true] %s53
      %s55 = sshll.u32 [#allocation8], 4
      %s56 = int_to_ptr.vmem [resolvable:$true] %s55
      %61 = dma.hbm_to_vmem [thread:$0]  %s54, 16384, %s56, [#allocation9], 64, 64, 4
    $region17: #{tpu_custom_call.1} parent=1 // pred_fallthru
      _
    // Predicated region
    $region18: #{tpu_custom_call.1} parent=1 // pred_check
      _
    $region19: #{tpu_custom_call.1} parent=1 // pred_check_branch
      %63 = sbr.rel (0) target = $region21
    $region20: #{tpu_custom_call.1} parent=1 // pred_region
      _
    $region21: #{tpu_custom_call.1} parent=1 // pred_fallthru
      _
    // Predicated region
    $region22: #{tpu_custom_call.1} parent=1 // pred_check
      _
    $region23: #{tpu_custom_call.1} parent=1 // pred_check_branch
      %65 = sbr.rel (0) target = $region25
    $region24: #{tpu_custom_call.1} parent=1 // pred_region
      %67 = dma.done [#allocation3], 256
    $region25: #{tpu_custom_call.1} parent=1 // pred_fallthru
      _
    // Predicated region
    $region26: #{tpu_custom_call.1} parent=1 // pred_check
      _
    $region27: #{tpu_custom_call.1} parent=1 // pred_check_branch
      %69 = sbr.rel (0) target = $region29
    $region28: #{tpu_custom_call.1} parent=1 // pred_region
      %71 = dma.done [#allocation6], 512
    $region29: #{tpu_custom_call.1} parent=1 // pred_fallthru
      _
    // Predicated region
    $region30: #{tpu_custom_call.1} parent=1 // pred_check
      _
    $region31: #{tpu_custom_call.1} parent=1 // pred_check_branch
      %73 = sbr.rel (0) target = $region33
    $region32: #{tpu_custom_call.1} parent=1 // pred_region
      %75 = dma.done [#allocation6], 256
    $region33: #{tpu_custom_call.1} parent=1 // pred_fallthru
      _
    // Predicated region
    $region34: #{tpu_custom_call.1} parent=1 // pred_check
      _
    $region35: #{tpu_custom_call.1} parent=1 // pred_check_branch
      %77 = sbr.rel (0) target = $region37
    $region36: #{tpu_custom_call.1} parent=1 // pred_region
      %79 = dma.done [#allocation9], 16384
    $region37: #{tpu_custom_call.1} parent=1 // pred_fallthru
      _
    %v81 = vld [vmem:[#allocation2] sm:$0xff]
    %v82 = vld [vmem:[#allocation2 + $0x8] sm:$0xff]
    %85 = vst [vmem:[#allocation1] ss:$2 sm:$0xff] %v81
    %v86 = vld.sshfl [vmem:[#allocation1] sm:$0xff pattern:$0x75316420]
    %v87 = vld.sshfl [vmem:[#allocation1 + $0x8] sm:$0xff pattern:$0x75316420]
    %s88 = scalar_lea.vmem [#allocation1], 16
    %89 = vst [vmem:[%s88] ss:$2 sm:$0xff] %v82
    %v90 = vld.sshfl [vmem:[#allocation1 + $0x10] sm:$0xff pattern:$0x75316420]
    %v91 = vld.sshfl [vmem:[#allocation1 + $0x18] sm:$0xff pattern:$0x75316420]
    %vm96 = vcmask 1043456
    %v97 = vsel %vm96, %v86, 0.0
    %v98 = vsel %vm96, %v87, 0.0
    %v99 = vadd.f32 %v97, %v98
    %100 = vadd.xlane.f32.xlu0 %v99
    %v101 = vpop.xlane.xlu0 %100
    %v102 = vsel %vm96, %v90, 0.0
    %v103 = vsel %vm96, %v91, 0.0
    %v104 = vadd.f32 %v102, %v103
    %105 = vadd.xlane.f32.xlu0 %v104
    %v106 = vpop.xlane.xlu0 %105
    %v107 = vpack.c.bf16 %v101, %v101
    %v108 = vpack.c.bf16 %v106, %v106
    %v109 = vld [vmem:[#allocation5] sm:$0xff]
    %v110 = vld [vmem:[#allocation5 + $0x8] sm:$0xff]
    %v111 = vld [vmem:[#allocation5 + $0x10] sm:$0xff]
    %v112 = vld [vmem:[#allocation5 + $0x18] sm:$0xff]
    %v113 = vld [vmem:[#allocation7] sm:$0xff]
    %v114 = vld [vmem:[#allocation7 + $0x8] sm:$0xff]
    %v117 = vperm.slane %v113, 0
    %v118 = vperm.slane %v113, 1
    %v119 = vperm.slane %v113, 2
    %v120 = vperm.slane %v113, 3
    %v121 = vperm.slane %v113, 4
    %v122 = vperm.slane %v113, 5
    %v123 = vperm.slane %v113, 6
    %v124 = vperm.slane %v113, 7
    %v125 = vperm.slane %v114, 0
    %v126 = vperm.slane %v114, 1
    %v127 = vperm.slane %v114, 2
    %v128 = vperm.slane %v114, 3
    %v129 = vperm.slane %v114, 4
    %v130 = vperm.slane %v114, 5
    %v131 = vperm.slane %v114, 6
    %v132 = vperm.slane %v114, 7
    %v151 = vunpack.c.l.b16 %v107
    %v152 = vunpack.c.l.b16 %v108
    %v153 = vlaneseq
    %v154 = vand.u32 %v153, 127
    %v155 = vperm.slane %v151, %v154
    %v156 = vperm.slane %v152, %v154
    %vm157 = vcmask 1041409
    %v158 = vsel %vm157, %v156, %v155
    %v159 = vpack.c.b16 %v158, %v158
    %161 = vst [vmem:[#allocation1] ss:$4 sm:$0xff] %v109
    %s163 = scalar_lea.vmem [#allocation1], 32
    %164 = vst [vmem:[%s163] ss:$4 sm:$0xff] %v110
    %v165 = vld.sshfl [vmem:[#allocation1] sm:$0xff pattern:$0x73625140]
    %v166 = vld.sshfl [vmem:[#allocation1 + $0x8] sm:$0xff pattern:$0x73625140]
    %v167 = vld.sshfl [vmem:[#allocation1 + $0x10] sm:$0xff pattern:$0x73625140]
    %v168 = vld.sshfl [vmem:[#allocation1 + $0x18] sm:$0xff pattern:$0x73625140]
    %v169 = vld.sshfl [vmem:[#allocation1 + $0x20] sm:$0xff pattern:$0x73625140]
    %v170 = vld.sshfl [vmem:[#allocation1 + $0x28] sm:$0xff pattern:$0x73625140]
    %v171 = vld.sshfl [vmem:[#allocation1 + $0x30] sm:$0xff pattern:$0x73625140]
    %v172 = vld.sshfl [vmem:[#allocation1 + $0x38] sm:$0xff pattern:$0x73625140]
    %174 = vst [vmem:[#allocation1] ss:$4 sm:$0xff] %v111
    %176 = vst [vmem:[%s163] ss:$4 sm:$0xff] %v112
    %v177 = vld.sshfl [vmem:[#allocation1] sm:$0xff pattern:$0x73625140]
    %v178 = vld.sshfl [vmem:[#allocation1 + $0x8] sm:$0xff pattern:$0x73625140]
    %v179 = vld.sshfl [vmem:[#allocation1 + $0x10] sm:$0xff pattern:$0x73625140]
    %v180 = vld.sshfl [vmem:[#allocation1 + $0x18] sm:$0xff pattern:$0x73625140]
    %v181 = vld.sshfl [vmem:[#allocation1 + $0x20] sm:$0xff pattern:$0x73625140]
    %v182 = vld.sshfl [vmem:[#allocation1 + $0x28] sm:$0xff pattern:$0x73625140]
    %v183 = vld.sshfl [vmem:[#allocation1 + $0x30] sm:$0xff pattern:$0x73625140]
    %v184 = vld.sshfl [vmem:[#allocation1 + $0x38] sm:$0xff pattern:$0x73625140]
    %vm185 = vcmask 31744
    %v187 = vsel %vm185, %v159, 0
    %vm189 = vcmask 1041408
    %v190 = vsel %vm189, %v165, 0
    %v192 = vsel %vm189, %v166, 0
    %v194 = vsel %vm189, %v167, 0
    %v196 = vsel %vm189, %v168, 0
    %v198 = vsel %vm189, %v169, 0
    %v200 = vsel %vm189, %v170, 0
    %v202 = vsel %vm189, %v171, 0
    %v204 = vsel %vm189, %v172, 0
    %v206 = vsel %vm189, %v177, 0
    %v208 = vsel %vm189, %v178, 0
    %v210 = vsel %vm189, %v179, 0
    %v212 = vsel %vm189, %v180, 0
    %v214 = vsel %vm189, %v181, 0
    %v216 = vsel %vm189, %v182, 0
    %v218 = vsel %vm189, %v183, 0
    %v220 = vsel %vm189, %v184, 0
    %222 = vmatpush.bf16.msra.mxu0 0
    %223 = vmatpush.bf16.msra.mxu0 0
    %224 = vmatpush.bf16.msra.mxu0 0
    %225 = vmatpush.bf16.msra.mxu0 0
    %226 = vmatpush.bf16.msra.mxu0 0
    %227 = vmatpush.bf16.msra.mxu0 0
    %228 = vmatpush.bf16.msra.mxu0 0
    %229 = vmatpush.bf16.msra.mxu0 %v190
    %230 = vmatmul.bf16.gmra.mxu0 %v187
    %v231 = vpop.f32.mrf.mxu0
    %v232 = vadd.f32 %v117, %v231
    %v233 = vpop.f32.mrf.mxu0
    %234 = vdwg.mxu0
    %235 = vmatpush.bf16.msra.mxu0 0
    %236 = vmatpush.bf16.msra.mxu0 0
    %237 = vmatpush.bf16.msra.mxu0 0
    %238 = vmatpush.bf16.msra.mxu0 0
    %239 = vmatpush.bf16.msra.mxu0 0
    %240 = vmatpush.bf16.msra.mxu0 0
    %241 = vmatpush.bf16.msra.mxu0 0
    %242 = vmatpush.bf16.msra.mxu0 %v192
    %243 = vmatmul.bf16.gmra.mxu0 %v187
    %v244 = vpop.f32.mrf.mxu0
    %v245 = vadd.f32 %v118, %v244
    %v246 = vpop.f32.mrf.mxu0
    %247 = vdwg.mxu0
    %248 = vmatpush.bf16.msra.mxu0 0
    %249 = vmatpush.bf16.msra.mxu0 0
    %250 = vmatpush.bf16.msra.mxu0 0
    %251 = vmatpush.bf16.msra.mxu0 0
    %252 = vmatpush.bf16.msra.mxu0 0
    %253 = vmatpush.bf16.msra.mxu0 0
    %254 = vmatpush.bf16.msra.mxu0 0
    %255 = vmatpush.bf16.msra.mxu0 %v194
    %256 = vmatmul.bf16.gmra.mxu0 %v187
    %v257 = vpop.f32.mrf.mxu0
    %v258 = vadd.f32 %v119, %v257
    %v259 = vpop.f32.mrf.mxu0
    %260 = vdwg.mxu0
    %261 = vmatpush.bf16.msra.mxu0 0
    %262 = vmatpush.bf16.msra.mxu0 0
    %263 = vmatpush.bf16.msra.mxu0 0
    %264 = vmatpush.bf16.msra.mxu0 0
    %265 = vmatpush.bf16.msra.mxu0 0
    %266 = vmatpush.bf16.msra.mxu0 0
    %267 = vmatpush.bf16.msra.mxu0 0
    %268 = vmatpush.bf16.msra.mxu0 %v196
    %269 = vmatmul.bf16.gmra.mxu0 %v187
    %v270 = vpop.f32.mrf.mxu0
    %v271 = vadd.f32 %v120, %v270
    %v272 = vpop.f32.mrf.mxu0
    %273 = vdwg.mxu0
    %274 = vmatpush.bf16.msra.mxu0 0
    %275 = vmatpush.bf16.msra.mxu0 0
    %276 = vmatpush.bf16.msra.mxu0 0
    %277 = vmatpush.bf16.msra.mxu0 0
    %278 = vmatpush.bf16.msra.mxu0 0
    %279 = vmatpush.bf16.msra.mxu0 0
    %280 = vmatpush.bf16.msra.mxu0 0
    %281 = vmatpush.bf16.msra.mxu0 %v198
    %282 = vmatmul.bf16.gmra.mxu0 %v187
    %v283 = vpop.f32.mrf.mxu0
    %v284 = vadd.f32 %v121, %v283
    %v285 = vpop.f32.mrf.mxu0
    %286 = vdwg.mxu0
    %287 = vmatpush.bf16.msra.mxu0 0
    %288 = vmatpush.bf16.msra.mxu0 0
    %289 = vmatpush.bf16.msra.mxu0 0
    %290 = vmatpush.bf16.msra.mxu0 0
    %291 = vmatpush.bf16.msra.mxu0 0
    %292 = vmatpush.bf16.msra.mxu0 0
    %293 = vmatpush.bf16.msra.mxu0 0
    %294 = vmatpush.bf16.msra.mxu0 %v200
    %295 = vmatmul.bf16.gmra.mxu0 %v187
    %v296 = vpop.f32.mrf.mxu0
    %v297 = vadd.f32 %v122, %v296
    %v298 = vpop.f32.mrf.mxu0
    %299 = vdwg.mxu0
    %300 = vmatpush.bf16.msra.mxu0 0
    %301 = vmatpush.bf16.msra.mxu0 0
    %302 = vmatpush.bf16.msra.mxu0 0
    %303 = vmatpush.bf16.msra.mxu0 0
    %304 = vmatpush.bf16.msra.mxu0 0
    %305 = vmatpush.bf16.msra.mxu0 0
    %306 = vmatpush.bf16.msra.mxu0 0
    %307 = vmatpush.bf16.msra.mxu0 %v202
    %308 = vmatmul.bf16.gmra.mxu0 %v187
    %v309 = vpop.f32.mrf.mxu0
    %v310 = vadd.f32 %v123, %v309
    %v311 = vpop.f32.mrf.mxu0
    %312 = vdwg.mxu0
    %313 = vmatpush.bf16.msra.mxu0 0
    %314 = vmatpush.bf16.msra.mxu0 0
    %315 = vmatpush.bf16.msra.mxu0 0
    %316 = vmatpush.bf16.msra.mxu0 0
    %317 = vmatpush.bf16.msra.mxu0 0
    %318 = vmatpush.bf16.msra.mxu0 0
    %319 = vmatpush.bf16.msra.mxu0 0
    %320 = vmatpush.bf16.msra.mxu0 %v204
    %321 = vmatmul.bf16.gmra.mxu0 %v187
    %v322 = vpop.f32.mrf.mxu0
    %v323 = vadd.f32 %v124, %v322
    %v324 = vpop.f32.mrf.mxu0
    %325 = vdwg.mxu0
    %326 = vmatpush.bf16.msra.mxu0 0
    %327 = vmatpush.bf16.msra.mxu0 0
    %328 = vmatpush.bf16.msra.mxu0 0
    %329 = vmatpush.bf16.msra.mxu0 0
    %330 = vmatpush.bf16.msra.mxu0 0
    %331 = vmatpush.bf16.msra.mxu0 0
    %332 = vmatpush.bf16.msra.mxu0 0
    %333 = vmatpush.bf16.msra.mxu0 %v206
    %334 = vmatmul.bf16.gmra.mxu0 %v187
    %v335 = vpop.f32.mrf.mxu0
    %v336 = vadd.f32 %v125, %v335
    %v337 = vpop.f32.mrf.mxu0
    %338 = vdwg.mxu0
    %339 = vmatpush.bf16.msra.mxu0 0
    %340 = vmatpush.bf16.msra.mxu0 0
    %341 = vmatpush.bf16.msra.mxu0 0
    %342 = vmatpush.bf16.msra.mxu0 0
    %343 = vmatpush.bf16.msra.mxu0 0
    %344 = vmatpush.bf16.msra.mxu0 0
    %345 = vmatpush.bf16.msra.mxu0 0
    %346 = vmatpush.bf16.msra.mxu0 %v208
    %347 = vmatmul.bf16.gmra.mxu0 %v187
    %v348 = vpop.f32.mrf.mxu0
    %v349 = vadd.f32 %v126, %v348
    %v350 = vpop.f32.mrf.mxu0
    %351 = vdwg.mxu0
    %352 = vmatpush.bf16.msra.mxu0 0
    %353 = vmatpush.bf16.msra.mxu0 0
    %354 = vmatpush.bf16.msra.mxu0 0
    %355 = vmatpush.bf16.msra.mxu0 0
    %356 = vmatpush.bf16.msra.mxu0 0
    %357 = vmatpush.bf16.msra.mxu0 0
    %358 = vmatpush.bf16.msra.mxu0 0
    %359 = vmatpush.bf16.msra.mxu0 %v210
    %360 = vmatmul.bf16.gmra.mxu0 %v187
    %v361 = vpop.f32.mrf.mxu0
    %v362 = vadd.f32 %v127, %v361
    %v363 = vpop.f32.mrf.mxu0
    %364 = vdwg.mxu0
    %365 = vmatpush.bf16.msra.mxu0 0
    %366 = vmatpush.bf16.msra.mxu0 0
    %367 = vmatpush.bf16.msra.mxu0 0
    %368 = vmatpush.bf16.msra.mxu0 0
    %369 = vmatpush.bf16.msra.mxu0 0
    %370 = vmatpush.bf16.msra.mxu0 0
    %371 = vmatpush.bf16.msra.mxu0 0
    %372 = vmatpush.bf16.msra.mxu0 %v212
    %373 = vmatmul.bf16.gmra.mxu0 %v187
    %v374 = vpop.f32.mrf.mxu0
    %v375 = vadd.f32 %v128, %v374
    %v376 = vpop.f32.mrf.mxu0
    %377 = vdwg.mxu0
    %378 = vmatpush.bf16.msra.mxu0 0
    %379 = vmatpush.bf16.msra.mxu0 0
    %380 = vmatpush.bf16.msra.mxu0 0
    %381 = vmatpush.bf16.msra.mxu0 0
    %382 = vmatpush.bf16.msra.mxu0 0
    %383 = vmatpush.bf16.msra.mxu0 0
    %384 = vmatpush.bf16.msra.mxu0 0
    %385 = vmatpush.bf16.msra.mxu0 %v214
    %386 = vmatmul.bf16.gmra.mxu0 %v187
    %v387 = vpop.f32.mrf.mxu0
    %v388 = vadd.f32 %v129, %v387
    %v389 = vpop.f32.mrf.mxu0
    %390 = vdwg.mxu0
    %391 = vmatpush.bf16.msra.mxu0 0
    %392 = vmatpush.bf16.msra.mxu0 0
    %393 = vmatpush.bf16.msra.mxu0 0
    %394 = vmatpush.bf16.msra.mxu0 0
    %395 = vmatpush.bf16.msra.mxu0 0
    %396 = vmatpush.bf16.msra.mxu0 0
    %397 = vmatpush.bf16.msra.mxu0 0
    %398 = vmatpush.bf16.msra.mxu0 %v216
    %399 = vmatmul.bf16.gmra.mxu0 %v187
    %v400 = vpop.f32.mrf.mxu0
    %v401 = vadd.f32 %v130, %v400
    %v402 = vpop.f32.mrf.mxu0
    %403 = vdwg.mxu0
    %404 = vmatpush.bf16.msra.mxu0 0
    %405 = vmatpush.bf16.msra.mxu0 0
    %406 = vmatpush.bf16.msra.mxu0 0
    %407 = vmatpush.bf16.msra.mxu0 0
    %408 = vmatpush.bf16.msra.mxu0 0
    %409 = vmatpush.bf16.msra.mxu0 0
    %410 = vmatpush.bf16.msra.mxu0 0
    %411 = vmatpush.bf16.msra.mxu0 %v218
    %412 = vmatmul.bf16.gmra.mxu0 %v187
    %v413 = vpop.f32.mrf.mxu0
    %v414 = vadd.f32 %v131, %v413
    %v415 = vpop.f32.mrf.mxu0
    %416 = vdwg.mxu0
    %417 = vmatpush.bf16.msra.mxu0 0
    %418 = vmatpush.bf16.msra.mxu0 0
    %419 = vmatpush.bf16.msra.mxu0 0
    %420 = vmatpush.bf16.msra.mxu0 0
    %421 = vmatpush.bf16.msra.mxu0 0
    %422 = vmatpush.bf16.msra.mxu0 0
    %423 = vmatpush.bf16.msra.mxu0 0
    %424 = vmatpush.bf16.msra.mxu0 %v220
    %425 = vmatmul.bf16.gmra.mxu0 %v187
    %v426 = vpop.f32.mrf.mxu0
    %v427 = vadd.f32 %v132, %v426
    %v428 = vpop.f32.mrf.mxu0
    %429 = vdwg.mxu0
    %v430 = vpack.c.bf16 %v232, %v232
    %v431 = vpack.c.bf16 %v245, %v245
    %v432 = vpack.c.bf16 %v258, %v258
    %v433 = vpack.c.bf16 %v271, %v271
    %v434 = vpack.c.bf16 %v284, %v284
    %v435 = vpack.c.bf16 %v297, %v297
    %v436 = vpack.c.bf16 %v310, %v310
    %v437 = vpack.c.bf16 %v323, %v323
    %v438 = vpack.c.bf16 %v336, %v336
    %v439 = vpack.c.bf16 %v349, %v349
    %v440 = vpack.c.bf16 %v362, %v362
    %v441 = vpack.c.bf16 %v375, %v375
    %v442 = vpack.c.bf16 %v388, %v388
    %v443 = vpack.c.bf16 %v401, %v401
    %v444 = vpack.c.bf16 %v414, %v414
    %v445 = vpack.c.bf16 %v427, %v427
    %v446 = vld [vmem:[#allocation8] sm:$0xf]
    %v447 = vld [vmem:[#allocation8 + $0x4] sm:$0xf]
    %v448 = vld [vmem:[#allocation8 + $0x8] sm:$0xf]
    %v449 = vld [vmem:[#allocation8 + $0xc] sm:$0xf]
    %v450 = vld [vmem:[#allocation8 + $0x10] sm:$0xf]
    %v451 = vld [vmem:[#allocation8 + $0x14] sm:$0xf]
    %v452 = vld [vmem:[#allocation8 + $0x18] sm:$0xf]
    %v453 = vld [vmem:[#allocation8 + $0x1c] sm:$0xf]
    %v454 = vld [vmem:[#allocation8 + $0x20] sm:$0xf]
    %v455 = vld [vmem:[#allocation8 + $0x24] sm:$0xf]
    %v456 = vld [vmem:[#allocation8 + $0x28] sm:$0xf]
    %v457 = vld [vmem:[#allocation8 + $0x2c] sm:$0xf]
    %v458 = vld [vmem:[#allocation8 + $0x30] sm:$0xf]
    %v459 = vld [vmem:[#allocation8 + $0x34] sm:$0xf]
    %v460 = vld [vmem:[#allocation8 + $0x38] sm:$0xf]
    %v461 = vld [vmem:[#allocation8 + $0x3c] sm:$0xf]
    %v462 = vld [vmem:[#allocation8 + $0x40] sm:$0xf]
    %v463 = vld [vmem:[#allocation8 + $0x44] sm:$0xf]
    %v464 = vld [vmem:[#allocation8 + $0x48] sm:$0xf]
    %v465 = vld [vmem:[#allocation8 + $0x4c] sm:$0xf]
    %v466 = vld [vmem:[#allocation8 + $0x50] sm:$0xf]
    %v467 = vld [vmem:[#allocation8 + $0x54] sm:$0xf]
    %v468 = vld [vmem:[#allocation8 + $0x58] sm:$0xf]
    %v469 = vld [vmem:[#allocation8 + $0x5c] sm:$0xf]
    %v470 = vld [vmem:[#allocation8 + $0x60] sm:$0xf]
    %v471 = vld [vmem:[#allocation8 + $0x64] sm:$0xf]
    %v472 = vld [vmem:[#allocation8 + $0x68] sm:$0xf]
    %v473 = vld [vmem:[#allocation8 + $0x6c] sm:$0xf]
    %v474 = vld [vmem:[#allocation8 + $0x70] sm:$0xf]
    %v475 = vld [vmem:[#allocation8 + $0x74] sm:$0xf]
    %v476 = vld [vmem:[#allocation8 + $0x78] sm:$0xf]
    %v477 = vld [vmem:[#allocation8 + $0x7c] sm:$0xf]
    %v478 = vld [vmem:[#allocation8 + $0x80] sm:$0xf]
    %v479 = vld [vmem:[#allocation8 + $0x84] sm:$0xf]
    %v480 = vld [vmem:[#allocation8 + $0x88] sm:$0xf]
    %v481 = vld [vmem:[#allocation8 + $0x8c] sm:$0xf]
    %v482 = vld [vmem:[#allocation8 + $0x90] sm:$0xf]
    %v483 = vld [vmem:[#allocation8 + $0x94] sm:$0xf]
    %v484 = vld [vmem:[#allocation8 + $0x98] sm:$0xf]
    %v485 = vld [vmem:[#allocation8 + $0x9c] sm:$0xf]
    %v486 = vld [vmem:[#allocation8 + $0xa0] sm:$0xf]
    %v487 = vld [vmem:[#allocation8 + $0xa4] sm:$0xf]
    %v488 = vld [vmem:[#allocation8 + $0xa8] sm:$0xf]
    %v489 = vld [vmem:[#allocation8 + $0xac] sm:$0xf]
    %v490 = vld [vmem:[#allocation8 + $0xb0] sm:$0xf]
    %v491 = vld [vmem:[#allocation8 + $0xb4] sm:$0xf]
    %v492 = vld [vmem:[#allocation8 + $0xb8] sm:$0xf]
    %v493 = vld [vmem:[#allocation8 + $0xbc] sm:$0xf]
    %v494 = vld [vmem:[#allocation8 + $0xc0] sm:$0xf]
    %v495 = vld [vmem:[#allocation8 + $0xc4] sm:$0xf]
    %v496 = vld [vmem:[#allocation8 + $0xc8] sm:$0xf]
    %v497 = vld [vmem:[#allocation8 + $0xcc] sm:$0xf]
    %v498 = vld [vmem:[#allocation8 + $0xd0] sm:$0xf]
    %v499 = vld [vmem:[#allocation8 + $0xd4] sm:$0xf]
    %v500 = vld [vmem:[#allocation8 + $0xd8] sm:$0xf]
    %v501 = vld [vmem:[#allocation8 + $0xdc] sm:$0xf]
    %v502 = vld [vmem:[#allocation8 + $0xe0] sm:$0xf]
    %v503 = vld [vmem:[#allocation8 + $0xe4] sm:$0xf]
    %v504 = vld [vmem:[#allocation8 + $0xe8] sm:$0xf]
    %v505 = vld [vmem:[#allocation8 + $0xec] sm:$0xf]
    %v506 = vld [vmem:[#allocation8 + $0xf0] sm:$0xf]
    %v507 = vld [vmem:[#allocation8 + $0xf4] sm:$0xf]
    %v508 = vld [vmem:[#allocation8 + $0xf8] sm:$0xf]
    %v509 = vld [vmem:[#allocation8 + $0xfc] sm:$0xf]
    %v510 = vld [vmem:[#allocation8 + $0x100] sm:$0xf]
    %v511 = vld [vmem:[#allocation8 + $0x104] sm:$0xf]
    %v512 = vld [vmem:[#allocation8 + $0x108] sm:$0xf]
    %v513 = vld [vmem:[#allocation8 + $0x10c] sm:$0xf]
    %v514 = vld [vmem:[#allocation8 + $0x110] sm:$0xf]
    %v515 = vld [vmem:[#allocation8 + $0x114] sm:$0xf]
    %v516 = vld [vmem:[#allocation8 + $0x118] sm:$0xf]
    %v517 = vld [vmem:[#allocation8 + $0x11c] sm:$0xf]
    %v518 = vld [vmem:[#allocation8 + $0x120] sm:$0xf]
    %v519 = vld [vmem:[#allocation8 + $0x124] sm:$0xf]
    %v520 = vld [vmem:[#allocation8 + $0x128] sm:$0xf]
    %v521 = vld [vmem:[#allocation8 + $0x12c] sm:$0xf]
    %v522 = vld [vmem:[#allocation8 + $0x130] sm:$0xf]
    %v523 = vld [vmem:[#allocation8 + $0x134] sm:$0xf]
    %v524 = vld [vmem:[#allocation8 + $0x138] sm:$0xf]
    %v525 = vld [vmem:[#allocation8 + $0x13c] sm:$0xf]
    %v526 = vld [vmem:[#allocation8 + $0x140] sm:$0xf]
    %v527 = vld [vmem:[#allocation8 + $0x144] sm:$0xf]
    %v528 = vld [vmem:[#allocation8 + $0x148] sm:$0xf]
    %v529 = vld [vmem:[#allocation8 + $0x14c] sm:$0xf]
    %v530 = vld [vmem:[#allocation8 + $0x150] sm:$0xf]
    %v531 = vld [vmem:[#allocation8 + $0x154] sm:$0xf]
    %v532 = vld [vmem:[#allocation8 + $0x158] sm:$0xf]
    %v533 = vld [vmem:[#allocation8 + $0x15c] sm:$0xf]
    %v534 = vld [vmem:[#allocation8 + $0x160] sm:$0xf]
    %v535 = vld [vmem:[#allocation8 + $0x164] sm:$0xf]
    %v536 = vld [vmem:[#allocation8 + $0x168] sm:$0xf]
    %v537 = vld [vmem:[#allocation8 + $0x16c] sm:$0xf]
    %v538 = vld [vmem:[#allocation8 + $0x170] sm:$0xf]
    %v539 = vld [vmem:[#allocation8 + $0x174] sm:$0xf]
    %v540 = vld [vmem:[#allocation8 + $0x178] sm:$0xf]
    %v541 = vld [vmem:[#allocation8 + $0x17c] sm:$0xf]
    %v542 = vld [vmem:[#allocation8 + $0x180] sm:$0xf]
    %v543 = vld [vmem:[#allocation8 + $0x184] sm:$0xf]
    %v544 = vld [vmem:[#allocation8 + $0x188] sm:$0xf]
    %v545 = vld [vmem:[#allocation8 + $0x18c] sm:$0xf]
    %v546 = vld [vmem:[#allocation8 + $0x190] sm:$0xf]
    %v547 = vld [vmem:[#allocation8 + $0x194] sm:$0xf]
    %v548 = vld [vmem:[#allocation8 + $0x198] sm:$0xf]
    %v549 = vld [vmem:[#allocation8 + $0x19c] sm:$0xf]
    %v550 = vld [vmem:[#allocation8 + $0x1a0] sm:$0xf]
    %v551 = vld [vmem:[#allocation8 + $0x1a4] sm:$0xf]
    %v552 = vld [vmem:[#allocation8 + $0x1a8] sm:$0xf]
    %v553 = vld [vmem:[#allocation8 + $0x1ac] sm:$0xf]
    %v554 = vld [vmem:[#allocation8 + $0x1b0] sm:$0xf]
    %v555 = vld [vmem:[#allocation8 + $0x1b4] sm:$0xf]
    %v556 = vld [vmem:[#allocation8 + $0x1b8] sm:$0xf]
    %v557 = vld [vmem:[#allocation8 + $0x1bc] sm:$0xf]
    %v558 = vld [vmem:[#allocation8 + $0x1c0] sm:$0xf]
    %v559 = vld [vmem:[#allocation8 + $0x1c4] sm:$0xf]
    %v560 = vld [vmem:[#allocation8 + $0x1c8] sm:$0xf]
    %v561 = vld [vmem:[#allocation8 + $0x1cc] sm:$0xf]
    %v562 = vld [vmem:[#allocation8 + $0x1d0] sm:$0xf]
    %v563 = vld [vmem:[#allocation8 + $0x1d4] sm:$0xf]
    %v564 = vld [vmem:[#allocation8 + $0x1d8] sm:$0xf]
    %v565 = vld [vmem:[#allocation8 + $0x1dc] sm:$0xf]
    %v566 = vld [vmem:[#allocation8 + $0x1e0] sm:$0xf]
    %v567 = vld [vmem:[#allocation8 + $0x1e4] sm:$0xf]
    %v568 = vld [vmem:[#allocation8 + $0x1e8] sm:$0xf]
    %v569 = vld [vmem:[#allocation8 + $0x1ec] sm:$0xf]
    %v570 = vld [vmem:[#allocation8 + $0x1f0] sm:$0xf]
    %v571 = vld [vmem:[#allocation8 + $0x1f4] sm:$0xf]
    %v572 = vld [vmem:[#allocation8 + $0x1f8] sm:$0xf]
    %v573 = vld [vmem:[#allocation8 + $0x1fc] sm:$0xf]
    %v574 = vld [vmem:[#allocation8 + $0x200] sm:$0xf]
    %v575 = vld [vmem:[#allocation8 + $0x204] sm:$0xf]
    %v576 = vld [vmem:[#allocation8 + $0x208] sm:$0xf]
    %v577 = vld [vmem:[#allocation8 + $0x20c] sm:$0xf]
    %v578 = vld [vmem:[#allocation8 + $0x210] sm:$0xf]
    %v579 = vld [vmem:[#allocation8 + $0x214] sm:$0xf]
    %v580 = vld [vmem:[#allocation8 + $0x218] sm:$0xf]
    %v581 = vld [vmem:[#allocation8 + $0x21c] sm:$0xf]
    %v582 = vld [vmem:[#allocation8 + $0x220] sm:$0xf]
    %v583 = vld [vmem:[#allocation8 + $0x224] sm:$0xf]
    %v584 = vld [vmem:[#allocation8 + $0x228] sm:$0xf]
    %v585 = vld [vmem:[#allocation8 + $0x22c] sm:$0xf]
    %v586 = vld [vmem:[#allocation8 + $0x230] sm:$0xf]
    %v587 = vld [vmem:[#allocation8 + $0x234] sm:$0xf]
    %v588 = vld [vmem:[#allocation8 + $0x238] sm:$0xf]
    %v589 = vld [vmem:[#allocation8 + $0x23c] sm:$0xf]
    %v590 = vld [vmem:[#allocation8 + $0x240] sm:$0xf]
    %v591 = vld [vmem:[#allocation8 + $0x244] sm:$0xf]
    %v592 = vld [vmem:[#allocation8 + $0x248] sm:$0xf]
    %v593 = vld [vmem:[#allocation8 + $0x24c] sm:$0xf]
    %v594 = vld [vmem:[#allocation8 + $0x250] sm:$0xf]
    %v595 = vld [vmem:[#allocation8 + $0x254] sm:$0xf]
    %v596 = vld [vmem:[#allocation8 + $0x258] sm:$0xf]
    %v597 = vld [vmem:[#allocation8 + $0x25c] sm:$0xf]
    %v598 = vld [vmem:[#allocation8 + $0x260] sm:$0xf]
    %v599 = vld [vmem:[#allocation8 + $0x264] sm:$0xf]
    %v600 = vld [vmem:[#allocation8 + $0x268] sm:$0xf]
    %v601 = vld [vmem:[#allocation8 + $0x26c] sm:$0xf]
    %v602 = vld [vmem:[#allocation8 + $0x270] sm:$0xf]
    %v603 = vld [vmem:[#allocation8 + $0x274] sm:$0xf]
    %v604 = vld [vmem:[#allocation8 + $0x278] sm:$0xf]
    %v605 = vld [vmem:[#allocation8 + $0x27c] sm:$0xf]
    %v606 = vld [vmem:[#allocation8 + $0x280] sm:$0xf]
    %v607 = vld [vmem:[#allocation8 + $0x284] sm:$0xf]
    %v608 = vld [vmem:[#allocation8 + $0x288] sm:$0xf]
    %v609 = vld [vmem:[#allocation8 + $0x28c] sm:$0xf]
    %v610 = vld [vmem:[#allocation8 + $0x290] sm:$0xf]
    %v611 = vld [vmem:[#allocation8 + $0x294] sm:$0xf]
    %v612 = vld [vmem:[#allocation8 + $0x298] sm:$0xf]
    %v613 = vld [vmem:[#allocation8 + $0x29c] sm:$0xf]
    %v614 = vld [vmem:[#allocation8 + $0x2a0] sm:$0xf]
    %v615 = vld [vmem:[#allocation8 + $0x2a4] sm:$0xf]
    %v616 = vld [vmem:[#allocation8 + $0x2a8] sm:$0xf]
    %v617 = vld [vmem:[#allocation8 + $0x2ac] sm:$0xf]
    %v618 = vld [vmem:[#allocation8 + $0x2b0] sm:$0xf]
    %v619 = vld [vmem:[#allocation8 + $0x2b4] sm:$0xf]
    %v620 = vld [vmem:[#allocation8 + $0x2b8] sm:$0xf]
    %v621 = vld [vmem:[#allocation8 + $0x2bc] sm:$0xf]
    %v622 = vld [vmem:[#allocation8 + $0x2c0] sm:$0xf]
    %v623 = vld [vmem:[#allocation8 + $0x2c4] sm:$0xf]
    %v624 = vld [vmem:[#allocation8 + $0x2c8] sm:$0xf]
    %v625 = vld [vmem:[#allocation8 + $0x2cc] sm:$0xf]
    %v626 = vld [vmem:[#allocation8 + $0x2d0] sm:$0xf]
    %v627 = vld [vmem:[#allocation8 + $0x2d4] sm:$0xf]
    %v628 = vld [vmem:[#allocation8 + $0x2d8] sm:$0xf]
    %v629 = vld [vmem:[#allocation8 + $0x2dc] sm:$0xf]
    %v630 = vld [vmem:[#allocation8 + $0x2e0] sm:$0xf]
    %v631 = vld [vmem:[#allocation8 + $0x2e4] sm:$0xf]
    %v632 = vld [vmem:[#allocation8 + $0x2e8] sm:$0xf]
    %v633 = vld [vmem:[#allocation8 + $0x2ec] sm:$0xf]
    %v634 = vld [vmem:[#allocation8 + $0x2f0] sm:$0xf]
    %v635 = vld [vmem:[#allocation8 + $0x2f4] sm:$0xf]
    %v636 = vld [vmem:[#allocation8 + $0x2f8] sm:$0xf]
    %v637 = vld [vmem:[#allocation8 + $0x2fc] sm:$0xf]
    %v638 = vld [vmem:[#allocation8 + $0x300] sm:$0xf]
    %v639 = vld [vmem:[#allocation8 + $0x304] sm:$0xf]
    %v640 = vld [vmem:[#allocation8 + $0x308] sm:$0xf]
    %v641 = vld [vmem:[#allocation8 + $0x30c] sm:$0xf]
    %v642 = vld [vmem:[#allocation8 + $0x310] sm:$0xf]
    %v643 = vld [vmem:[#allocation8 + $0x314] sm:$0xf]
    %v644 = vld [vmem:[#allocation8 + $0x318] sm:$0xf]
    %v645 = vld [vmem:[#allocation8 + $0x31c] sm:$0xf]
    %v646 = vld [vmem:[#allocation8 + $0x320] sm:$0xf]
    %v647 = vld [vmem:[#allocation8 + $0x324] sm:$0xf]
    %v648 = vld [vmem:[#allocation8 + $0x328] sm:$0xf]
    %v649 = vld [vmem:[#allocation8 + $0x32c] sm:$0xf]
    %v650 = vld [vmem:[#allocation8 + $0x330] sm:$0xf]
    %v651 = vld [vmem:[#allocation8 + $0x334] sm:$0xf]
    %v652 = vld [vmem:[#allocation8 + $0x338] sm:$0xf]
    %v653 = vld [vmem:[#allocation8 + $0x33c] sm:$0xf]
    %v654 = vld [vmem:[#allocation8 + $0x340] sm:$0xf]
    %v655 = vld [vmem:[#allocation8 + $0x344] sm:$0xf]
    %v656 = vld [vmem:[#allocation8 + $0x348] sm:$0xf]
    %v657 = vld [vmem:[#allocation8 + $0x34c] sm:$0xf]
    %v658 = vld [vmem:[#allocation8 + $0x350] sm:$0xf]
    %v659 = vld [vmem:[#allocation8 + $0x354] sm:$0xf]
    %v660 = vld [vmem:[#allocation8 + $0x358] sm:$0xf]
    %v661 = vld [vmem:[#allocation8 + $0x35c] sm:$0xf]
    %v662 = vld [vmem:[#allocation8 + $0x360] sm:$0xf]
    %v663 = vld [vmem:[#allocation8 + $0x364] sm:$0xf]
    %v664 = vld [vmem:[#allocation8 + $0x368] sm:$0xf]
    %v665 = vld [vmem:[#allocation8 + $0x36c] sm:$0xf]
    %v666 = vld [vmem:[#allocation8 + $0x370] sm:$0xf]
    %v667 = vld [vmem:[#allocation8 + $0x374] sm:$0xf]
    %v668 = vld [vmem:[#allocation8 + $0x378] sm:$0xf]
    %v669 = vld [vmem:[#allocation8 + $0x37c] sm:$0xf]
    %v670 = vld [vmem:[#allocation8 + $0x380] sm:$0xf]
    %v671 = vld [vmem:[#allocation8 + $0x384] sm:$0xf]
    %v672 = vld [vmem:[#allocation8 + $0x388] sm:$0xf]
    %v673 = vld [vmem:[#allocation8 + $0x38c] sm:$0xf]
    %v674 = vld [vmem:[#allocation8 + $0x390] sm:$0xf]
    %v675 = vld [vmem:[#allocation8 + $0x394] sm:$0xf]
    %v676 = vld [vmem:[#allocation8 + $0x398] sm:$0xf]
    %v677 = vld [vmem:[#allocation8 + $0x39c] sm:$0xf]
    %v678 = vld [vmem:[#allocation8 + $0x3a0] sm:$0xf]
    %v679 = vld [vmem:[#allocation8 + $0x3a4] sm:$0xf]
    %v680 = vld [vmem:[#allocation8 + $0x3a8] sm:$0xf]
    %v681 = vld [vmem:[#allocation8 + $0x3ac] sm:$0xf]
    %v682 = vld [vmem:[#allocation8 + $0x3b0] sm:$0xf]
    %v683 = vld [vmem:[#allocation8 + $0x3b4] sm:$0xf]
    %v684 = vld [vmem:[#allocation8 + $0x3b8] sm:$0xf]
    %v685 = vld [vmem:[#allocation8 + $0x3bc] sm:$0xf]
    %v686 = vld [vmem:[#allocation8 + $0x3c0] sm:$0xf]
    %v687 = vld [vmem:[#allocation8 + $0x3c4] sm:$0xf]
    %v688 = vld [vmem:[#allocation8 + $0x3c8] sm:$0xf]
    %v689 = vld [vmem:[#allocation8 + $0x3cc] sm:$0xf]
    %v690 = vld [vmem:[#allocation8 + $0x3d0] sm:$0xf]
    %v691 = vld [vmem:[#allocation8 + $0x3d4] sm:$0xf]
    %v692 = vld [vmem:[#allocation8 + $0x3d8] sm:$0xf]
    %v693 = vld [vmem:[#allocation8 + $0x3dc] sm:$0xf]
    %v694 = vld [vmem:[#allocation8 + $0x3e0] sm:$0xf]
    %v695 = vld [vmem:[#allocation8 + $0x3e4] sm:$0xf]
    %v696 = vld [vmem:[#allocation8 + $0x3e8] sm:$0xf]
    %v697 = vld [vmem:[#allocation8 + $0x3ec] sm:$0xf]
    %v698 = vld [vmem:[#allocation8 + $0x3f0] sm:$0xf]
    %v699 = vld [vmem:[#allocation8 + $0x3f4] sm:$0xf]
    %v700 = vld [vmem:[#allocation8 + $0x3f8] sm:$0xf]
    %v701 = vld [vmem:[#allocation8 + $0x3fc] sm:$0xf]
    %v702 = vld [vmem:[%s4] sm:$0x1]
    %v704 = vperm.slane %v702, 0
    %v962 = vunpack.c.l.b16 %v446
    %v963 = vunpack.c.l.b16 %v447
    %v964 = vunpack.c.l.b16 %v448
    %v965 = vunpack.c.l.b16 %v449
    %v966 = vunpack.c.l.b16 %v450
    %v967 = vunpack.c.l.b16 %v451
    %v968 = vunpack.c.l.b16 %v452
    %v969 = vunpack.c.l.b16 %v453
    %v970 = vunpack.c.l.b16 %v454
    %v971 = vunpack.c.l.b16 %v455
    %v972 = vunpack.c.l.b16 %v456
    %v973 = vunpack.c.l.b16 %v457
    %v974 = vunpack.c.l.b16 %v458
    %v975 = vunpack.c.l.b16 %v459
    %v976 = vunpack.c.l.b16 %v460
    %v977 = vunpack.c.l.b16 %v461
    %v978 = vunpack.c.l.b16 %v462
    %v979 = vunpack.c.l.b16 %v463
    %v980 = vunpack.c.l.b16 %v464
    %v981 = vunpack.c.l.b16 %v465
    %v982 = vunpack.c.l.b16 %v466
    %v983 = vunpack.c.l.b16 %v467
    %v984 = vunpack.c.l.b16 %v468
    %v985 = vunpack.c.l.b16 %v469
    %v986 = vunpack.c.l.b16 %v470
    %v987 = vunpack.c.l.b16 %v471
    %v988 = vunpack.c.l.b16 %v472
    %v989 = vunpack.c.l.b16 %v473
    %v990 = vunpack.c.l.b16 %v474
    %v991 = vunpack.c.l.b16 %v475
    %v992 = vunpack.c.l.b16 %v476
    %v993 = vunpack.c.l.b16 %v477
    %v994 = vunpack.c.l.b16 %v478
    %v995 = vunpack.c.l.b16 %v479
    %v996 = vunpack.c.l.b16 %v480
    %v997 = vunpack.c.l.b16 %v481
    %v998 = vunpack.c.l.b16 %v482
    %v999 = vunpack.c.l.b16 %v483
    %v1000 = vunpack.c.l.b16 %v484
    %v1001 = vunpack.c.l.b16 %v485
    %v1002 = vunpack.c.l.b16 %v486
    %v1003 = vunpack.c.l.b16 %v487
    %v1004 = vunpack.c.l.b16 %v488
    %v1005 = vunpack.c.l.b16 %v489
    %v1006 = vunpack.c.l.b16 %v490
    %v1007 = vunpack.c.l.b16 %v491
    %v1008 = vunpack.c.l.b16 %v492
    %v1009 = vunpack.c.l.b16 %v493
    %v1010 = vunpack.c.l.b16 %v494
    %v1011 = vunpack.c.l.b16 %v495
    %v1012 = vunpack.c.l.b16 %v496
    %v1013 = vunpack.c.l.b16 %v497
    %v1014 = vunpack.c.l.b16 %v498
    %v1015 = vunpack.c.l.b16 %v499
    %v1016 = vunpack.c.l.b16 %v500
    %v1017 = vunpack.c.l.b16 %v501
    %v1018 = vunpack.c.l.b16 %v502
    %v1019 = vunpack.c.l.b16 %v503
    %v1020 = vunpack.c.l.b16 %v504
    %v1021 = vunpack.c.l.b16 %v505
    %v1022 = vunpack.c.l.b16 %v506
    %v1023 = vunpack.c.l.b16 %v507
    %v1024 = vunpack.c.l.b16 %v508
    %v1025 = vunpack.c.l.b16 %v509
    %v1026 = vunpack.c.l.b16 %v510
    %v1027 = vunpack.c.l.b16 %v511
    %v1028 = vunpack.c.l.b16 %v512
    %v1029 = vunpack.c.l.b16 %v513
    %v1030 = vunpack.c.l.b16 %v514
    %v1031 = vunpack.c.l.b16 %v515
    %v1032 = vunpack.c.l.b16 %v516
    %v1033 = vunpack.c.l.b16 %v517
    %v1034 = vunpack.c.l.b16 %v518
    %v1035 = vunpack.c.l.b16 %v519
    %v1036 = vunpack.c.l.b16 %v520
    %v1037 = vunpack.c.l.b16 %v521
    %v1038 = vunpack.c.l.b16 %v522
    %v1039 = vunpack.c.l.b16 %v523
    %v1040 = vunpack.c.l.b16 %v524
    %v1041 = vunpack.c.l.b16 %v525
    %v1042 = vunpack.c.l.b16 %v526
    %v1043 = vunpack.c.l.b16 %v527
    %v1044 = vunpack.c.l.b16 %v528
    %v1045 = vunpack.c.l.b16 %v529
    %v1046 = vunpack.c.l.b16 %v530
    %v1047 = vunpack.c.l.b16 %v531
    %v1048 = vunpack.c.l.b16 %v532
    %v1049 = vunpack.c.l.b16 %v533
    %v1050 = vunpack.c.l.b16 %v534
    %v1051 = vunpack.c.l.b16 %v535
    %v1052 = vunpack.c.l.b16 %v536
    %v1053 = vunpack.c.l.b16 %v537
    %v1054 = vunpack.c.l.b16 %v538
    %v1055 = vunpack.c.l.b16 %v539
    %v1056 = vunpack.c.l.b16 %v540
    %v1057 = vunpack.c.l.b16 %v541
    %v1058 = vunpack.c.l.b16 %v542
    %v1059 = vunpack.c.l.b16 %v543
    %v1060 = vunpack.c.l.b16 %v544
    %v1061 = vunpack.c.l.b16 %v545
    %v1062 = vunpack.c.l.b16 %v546
    %v1063 = vunpack.c.l.b16 %v547
    %v1064 = vunpack.c.l.b16 %v548
    %v1065 = vunpack.c.l.b16 %v549
    %v1066 = vunpack.c.l.b16 %v550
    %v1067 = vunpack.c.l.b16 %v551
    %v1068 = vunpack.c.l.b16 %v552
    %v1069 = vunpack.c.l.b16 %v553
    %v1070 = vunpack.c.l.b16 %v554
    %v1071 = vunpack.c.l.b16 %v555
    %v1072 = vunpack.c.l.b16 %v556
    %v1073 = vunpack.c.l.b16 %v557
    %v1074 = vunpack.c.l.b16 %v558
    %v1075 = vunpack.c.l.b16 %v559
    %v1076 = vunpack.c.l.b16 %v560
    %v1077 = vunpack.c.l.b16 %v561
    %v1078 = vunpack.c.l.b16 %v562
    %v1079 = vunpack.c.l.b16 %v563
    %v1080 = vunpack.c.l.b16 %v564
    %v1081 = vunpack.c.l.b16 %v565
    %v1082 = vunpack.c.l.b16 %v566
    %v1083 = vunpack.c.l.b16 %v567
    %v1084 = vunpack.c.l.b16 %v568
    %v1085 = vunpack.c.l.b16 %v569
    %v1086 = vunpack.c.l.b16 %v570
    %v1087 = vunpack.c.l.b16 %v571
    %v1088 = vunpack.c.l.b16 %v572
    %v1089 = vunpack.c.l.b16 %v573
    %v1090 = vunpack.c.l.b16 %v574
    %v1091 = vunpack.c.l.b16 %v575
    %v1092 = vunpack.c.l.b16 %v576
    %v1093 = vunpack.c.l.b16 %v577
    %v1094 = vunpack.c.l.b16 %v578
    %v1095 = vunpack.c.l.b16 %v579
    %v1096 = vunpack.c.l.b16 %v580
    %v1097 = vunpack.c.l.b16 %v581
    %v1098 = vunpack.c.l.b16 %v582
    %v1099 = vunpack.c.l.b16 %v583
    %v1100 = vunpack.c.l.b16 %v584
    %v1101 = vunpack.c.l.b16 %v585
    %v1102 = vunpack.c.l.b16 %v586
    %v1103 = vunpack.c.l.b16 %v587
    %v1104 = vunpack.c.l.b16 %v588
    %v1105 = vunpack.c.l.b16 %v589
    %v1106 = vunpack.c.l.b16 %v590
    %v1107 = vunpack.c.l.b16 %v591
    %v1108 = vunpack.c.l.b16 %v592
    %v1109 = vunpack.c.l.b16 %v593
    %v1110 = vunpack.c.l.b16 %v594
    %v1111 = vunpack.c.l.b16 %v595
    %v1112 = vunpack.c.l.b16 %v596
    %v1113 = vunpack.c.l.b16 %v597
    %v1114 = vunpack.c.l.b16 %v598
    %v1115 = vunpack.c.l.b16 %v599
    %v1116 = vunpack.c.l.b16 %v600
    %v1117 = vunpack.c.l.b16 %v601
    %v1118 = vunpack.c.l.b16 %v602
    %v1119 = vunpack.c.l.b16 %v603
    %v1120 = vunpack.c.l.b16 %v604
    %v1121 = vunpack.c.l.b16 %v605
    %v1122 = vunpack.c.l.b16 %v606
    %v1123 = vunpack.c.l.b16 %v607
    %v1124 = vunpack.c.l.b16 %v608
    %v1125 = vunpack.c.l.b16 %v609
    %v1126 = vunpack.c.l.b16 %v610
    %v1127 = vunpack.c.l.b16 %v611
    %v1128 = vunpack.c.l.b16 %v612
    %v1129 = vunpack.c.l.b16 %v613
    %v1130 = vunpack.c.l.b16 %v614
    %v1131 = vunpack.c.l.b16 %v615
    %v1132 = vunpack.c.l.b16 %v616
    %v1133 = vunpack.c.l.b16 %v617
    %v1134 = vunpack.c.l.b16 %v618
    %v1135 = vunpack.c.l.b16 %v619
    %v1136 = vunpack.c.l.b16 %v620
    %v1137 = vunpack.c.l.b16 %v621
    %v1138 = vunpack.c.l.b16 %v622
    %v1139 = vunpack.c.l.b16 %v623
    %v1140 = vunpack.c.l.b16 %v624
    %v1141 = vunpack.c.l.b16 %v625
    %v1142 = vunpack.c.l.b16 %v626
    %v1143 = vunpack.c.l.b16 %v627
    %v1144 = vunpack.c.l.b16 %v628
    %v1145 = vunpack.c.l.b16 %v629
    %v1146 = vunpack.c.l.b16 %v630
    %v1147 = vunpack.c.l.b16 %v631
    %v1148 = vunpack.c.l.b16 %v632
    %v1149 = vunpack.c.l.b16 %v633
    %v1150 = vunpack.c.l.b16 %v634
    %v1151 = vunpack.c.l.b16 %v635
    %v1152 = vunpack.c.l.b16 %v636
    %v1153 = vunpack.c.l.b16 %v637
    %v1154 = vunpack.c.l.b16 %v638
    %v1155 = vunpack.c.l.b16 %v639
    %v1156 = vunpack.c.l.b16 %v640
    %v1157 = vunpack.c.l.b16 %v641
    %v1158 = vunpack.c.l.b16 %v642
    %v1159 = vunpack.c.l.b16 %v643
    %v1160 = vunpack.c.l.b16 %v644
    %v1161 = vunpack.c.l.b16 %v645
    %v1162 = vunpack.c.l.b16 %v646
    %v1163 = vunpack.c.l.b16 %v647
    %v1164 = vunpack.c.l.b16 %v648
    %v1165 = vunpack.c.l.b16 %v649
    %v1166 = vunpack.c.l.b16 %v650
    %v1167 = vunpack.c.l.b16 %v651
    %v1168 = vunpack.c.l.b16 %v652
    %v1169 = vunpack.c.l.b16 %v653
    %v1170 = vunpack.c.l.b16 %v654
    %v1171 = vunpack.c.l.b16 %v655
    %v1172 = vunpack.c.l.b16 %v656
    %v1173 = vunpack.c.l.b16 %v657
    %v1174 = vunpack.c.l.b16 %v658
    %v1175 = vunpack.c.l.b16 %v659
    %v1176 = vunpack.c.l.b16 %v660
    %v1177 = vunpack.c.l.b16 %v661
    %v1178 = vunpack.c.l.b16 %v662
    %v1179 = vunpack.c.l.b16 %v663
    %v1180 = vunpack.c.l.b16 %v664
    %v1181 = vunpack.c.l.b16 %v665
    %v1182 = vunpack.c.l.b16 %v666
    %v1183 = vunpack.c.l.b16 %v667
    %v1184 = vunpack.c.l.b16 %v668
    %v1185 = vunpack.c.l.b16 %v669
    %v1186 = vunpack.c.l.b16 %v670
    %v1187 = vunpack.c.l.b16 %v671
    %v1188 = vunpack.c.l.b16 %v672
    %v1189 = vunpack.c.l.b16 %v673
    %v1190 = vunpack.c.l.b16 %v674
    %v1191 = vunpack.c.l.b16 %v675
    %v1192 = vunpack.c.l.b16 %v676
    %v1193 = vunpack.c.l.b16 %v677
    %v1194 = vunpack.c.l.b16 %v678
    %v1195 = vunpack.c.l.b16 %v679
    %v1196 = vunpack.c.l.b16 %v680
    %v1197 = vunpack.c.l.b16 %v681
    %v1198 = vunpack.c.l.b16 %v682
    %v1199 = vunpack.c.l.b16 %v683
    %v1200 = vunpack.c.l.b16 %v684
    %v1201 = vunpack.c.l.b16 %v685
    %v1202 = vunpack.c.l.b16 %v686
    %v1203 = vunpack.c.l.b16 %v687
    %v1204 = vunpack.c.l.b16 %v688
    %v1205 = vunpack.c.l.b16 %v689
    %v1206 = vunpack.c.l.b16 %v690
    %v1207 = vunpack.c.l.b16 %v691
    %v1208 = vunpack.c.l.b16 %v692
    %v1209 = vunpack.c.l.b16 %v693
    %v1210 = vunpack.c.l.b16 %v694
    %v1211 = vunpack.c.l.b16 %v695
    %v1212 = vunpack.c.l.b16 %v696
    %v1213 = vunpack.c.l.b16 %v697
    %v1214 = vunpack.c.l.b16 %v698
    %v1215 = vunpack.c.l.b16 %v699
    %v1216 = vunpack.c.l.b16 %v700
    %v1217 = vunpack.c.l.b16 %v701
    %v1218 = vpack.c.b16 %v963, %v962
    %v1219 = vpack.c.b16 %v965, %v964
    %v1220 = vpack.c.b16 %v967, %v966
    %v1221 = vpack.c.b16 %v969, %v968
    %v1222 = vpack.c.b16 %v971, %v970
    %v1223 = vpack.c.b16 %v973, %v972
    %v1224 = vpack.c.b16 %v975, %v974
    %v1225 = vpack.c.b16 %v977, %v976
    %v1226 = vpack.c.b16 %v979, %v978
    %v1227 = vpack.c.b16 %v981, %v980
    %v1228 = vpack.c.b16 %v983, %v982
    %v1229 = vpack.c.b16 %v985, %v984
    %v1230 = vpack.c.b16 %v987, %v986
    %v1231 = vpack.c.b16 %v989, %v988
    %v1232 = vpack.c.b16 %v991, %v990
    %v1233 = vpack.c.b16 %v993, %v992
    %v1234 = vpack.c.b16 %v995, %v994
    %v1235 = vpack.c.b16 %v997, %v996
    %v1236 = vpack.c.b16 %v999, %v998
    %v1237 = vpack.c.b16 %v1001, %v1000
    %v1238 = vpack.c.b16 %v1003, %v1002
    %v1239 = vpack.c.b16 %v1005, %v1004
    %v1240 = vpack.c.b16 %v1007, %v1006
    %v1241 = vpack.c.b16 %v1009, %v1008
    %v1242 = vpack.c.b16 %v1011, %v1010
    %v1243 = vpack.c.b16 %v1013, %v1012
    %v1244 = vpack.c.b16 %v1015, %v1014
    %v1245 = vpack.c.b16 %v1017, %v1016
    %v1246 = vpack.c.b16 %v1019, %v1018
    %v1247 = vpack.c.b16 %v1021, %v1020
    %v1248 = vpack.c.b16 %v1023, %v1022
    %v1249 = vpack.c.b16 %v1025, %v1024
    %v1250 = vpack.c.b16 %v1027, %v1026
    %v1251 = vpack.c.b16 %v1029, %v1028
    %v1252 = vpack.c.b16 %v1031, %v1030
    %v1253 = vpack.c.b16 %v1033, %v1032
    %v1254 = vpack.c.b16 %v1035, %v1034
    %v1255 = vpack.c.b16 %v1037, %v1036
    %v1256 = vpack.c.b16 %v1039, %v1038
    %v1257 = vpack.c.b16 %v1041, %v1040
    %v1258 = vpack.c.b16 %v1043, %v1042
    %v1259 = vpack.c.b16 %v1045, %v1044
    %v1260 = vpack.c.b16 %v1047, %v1046
    %v1261 = vpack.c.b16 %v1049, %v1048
    %v1262 = vpack.c.b16 %v1051, %v1050
    %v1263 = vpack.c.b16 %v1053, %v1052
    %v1264 = vpack.c.b16 %v1055, %v1054
    %v1265 = vpack.c.b16 %v1057, %v1056
    %v1266 = vpack.c.b16 %v1059, %v1058
    %v1267 = vpack.c.b16 %v1061, %v1060
    %v1268 = vpack.c.b16 %v1063, %v1062
    %v1269 = vpack.c.b16 %v1065, %v1064
    %v1270 = vpack.c.b16 %v1067, %v1066
    %v1271 = vpack.c.b16 %v1069, %v1068
    %v1272 = vpack.c.b16 %v1071, %v1070
    %v1273 = vpack.c.b16 %v1073, %v1072
    %v1274 = vpack.c.b16 %v1075, %v1074
    %v1275 = vpack.c.b16 %v1077, %v1076
    %v1276 = vpack.c.b16 %v1079, %v1078
    %v1277 = vpack.c.b16 %v1081, %v1080
    %v1278 = vpack.c.b16 %v1083, %v1082
    %v1279 = vpack.c.b16 %v1085, %v1084
    %v1280 = vpack.c.b16 %v1087, %v1086
    %v1281 = vpack.c.b16 %v1089, %v1088
    %v1282 = vpack.c.b16 %v1091, %v1090
    %v1283 = vpack.c.b16 %v1093, %v1092
    %v1284 = vpack.c.b16 %v1095, %v1094
    %v1285 = vpack.c.b16 %v1097, %v1096
    %v1286 = vpack.c.b16 %v1099, %v1098
    %v1287 = vpack.c.b16 %v1101, %v1100
    %v1288 = vpack.c.b16 %v1103, %v1102
    %v1289 = vpack.c.b16 %v1105, %v1104
    %v1290 = vpack.c.b16 %v1107, %v1106
    %v1291 = vpack.c.b16 %v1109, %v1108
    %v1292 = vpack.c.b16 %v1111, %v1110
    %v1293 = vpack.c.b16 %v1113, %v1112
    %v1294 = vpack.c.b16 %v1115, %v1114
    %v1295 = vpack.c.b16 %v1117, %v1116
    %v1296 = vpack.c.b16 %v1119, %v1118
    %v1297 = vpack.c.b16 %v1121, %v1120
    %v1298 = vpack.c.b16 %v1123, %v1122
    %v1299 = vpack.c.b16 %v1125, %v1124
    %v1300 = vpack.c.b16 %v1127, %v1126
    %v1301 = vpack.c.b16 %v1129, %v1128
    %v1302 = vpack.c.b16 %v1131, %v1130
    %v1303 = vpack.c.b16 %v1133, %v1132
    %v1304 = vpack.c.b16 %v1135, %v1134
    %v1305 = vpack.c.b16 %v1137, %v1136
    %v1306 = vpack.c.b16 %v1139, %v1138
    %v1307 = vpack.c.b16 %v1141, %v1140
    %v1308 = vpack.c.b16 %v1143, %v1142
    %v1309 = vpack.c.b16 %v1145, %v1144
    %v1310 = vpack.c.b16 %v1147, %v1146
    %v1311 = vpack.c.b16 %v1149, %v1148
    %v1312 = vpack.c.b16 %v1151, %v1150
    %v1313 = vpack.c.b16 %v1153, %v1152
    %v1314 = vpack.c.b16 %v1155, %v1154
    %v1315 = vpack.c.b16 %v1157, %v1156
    %v1316 = vpack.c.b16 %v1159, %v1158
    %v1317 = vpack.c.b16 %v1161, %v1160
    %v1318 = vpack.c.b16 %v1163, %v1162
    %v1319 = vpack.c.b16 %v1165, %v1164
    %v1320 = vpack.c.b16 %v1167, %v1166
    %v1321 = vpack.c.b16 %v1169, %v1168
    %v1322 = vpack.c.b16 %v1171, %v1170
    %v1323 = vpack.c.b16 %v1173, %v1172
    %v1324 = vpack.c.b16 %v1175, %v1174
    %v1325 = vpack.c.b16 %v1177, %v1176
    %v1326 = vpack.c.b16 %v1179, %v1178
    %v1327 = vpack.c.b16 %v1181, %v1180
    %v1328 = vpack.c.b16 %v1183, %v1182
    %v1329 = vpack.c.b16 %v1185, %v1184
    %v1330 = vpack.c.b16 %v1187, %v1186
    %v1331 = vpack.c.b16 %v1189, %v1188
    %v1332 = vpack.c.b16 %v1191, %v1190
    %v1333 = vpack.c.b16 %v1193, %v1192
    %v1334 = vpack.c.b16 %v1195, %v1194
    %v1335 = vpack.c.b16 %v1197, %v1196
    %v1336 = vpack.c.b16 %v1199, %v1198
    %v1337 = vpack.c.b16 %v1201, %v1200
    %v1338 = vpack.c.b16 %v1203, %v1202
    %v1339 = vpack.c.b16 %v1205, %v1204
    %v1340 = vpack.c.b16 %v1207, %v1206
    %v1341 = vpack.c.b16 %v1209, %v1208
    %v1342 = vpack.c.b16 %v1211, %v1210
    %v1343 = vpack.c.b16 %v1213, %v1212
    %v1344 = vpack.c.b16 %v1215, %v1214
    %v1345 = vpack.c.b16 %v1217, %v1216
    %1474 = vmatpush.bf16.msra.mxu0 %v1225
    %1475 = vmatpush.bf16.msra.mxu0 %v1224
    %1476 = vmatpush.bf16.msra.mxu0 %v1223
    %1477 = vmatpush.bf16.msra.mxu0 %v1222
    %1478 = vmatpush.bf16.msra.mxu0 %v1221
    %1479 = vmatpush.bf16.msra.mxu0 %v1220
    %1480 = vmatpush.bf16.msra.mxu0 %v1219
    %1481 = vmatpush.bf16.msra.mxu0 %v1218
    %1482 = vmatmul.bf16.gmra.mxu0 %v430
    %v1483 = vpop.f32.mrf.mxu0
    %v1484 = vadd.f32 %v704, %v1483
    %v1485 = vpop.f32.mrf.mxu0
    %1486 = vdwg.mxu0
    %1487 = vmatpush.bf16.msra.mxu0 %v1233
    %1488 = vmatpush.bf16.msra.mxu0 %v1232
    %1489 = vmatpush.bf16.msra.mxu0 %v1231
    %1490 = vmatpush.bf16.msra.mxu0 %v1230
    %1491 = vmatpush.bf16.msra.mxu0 %v1229
    %1492 = vmatpush.bf16.msra.mxu0 %v1228
    %1493 = vmatpush.bf16.msra.mxu0 %v1227
    %1494 = vmatpush.bf16.msra.mxu0 %v1226
    %1495 = vmatmul.bf16.gmra.mxu0 %v431
    %v1496 = vpop.f32.mrf.mxu0
    %v1497 = vadd.f32 %v1484, %v1496
    %v1498 = vpop.f32.mrf.mxu0
    %1499 = vdwg.mxu0
    %1500 = vmatpush.bf16.msra.mxu0 %v1241
    %1501 = vmatpush.bf16.msra.mxu0 %v1240
    %1502 = vmatpush.bf16.msra.mxu0 %v1239
    %1503 = vmatpush.bf16.msra.mxu0 %v1238
    %1504 = vmatpush.bf16.msra.mxu0 %v1237
    %1505 = vmatpush.bf16.msra.mxu0 %v1236
    %1506 = vmatpush.bf16.msra.mxu0 %v1235
    %1507 = vmatpush.bf16.msra.mxu0 %v1234
    %1508 = vmatmul.bf16.gmra.mxu0 %v432
    %v1509 = vpop.f32.mrf.mxu0
    %v1510 = vadd.f32 %v1497, %v1509
    %v1511 = vpop.f32.mrf.mxu0
    %1512 = vdwg.mxu0
    %1513 = vmatpush.bf16.msra.mxu0 %v1249
    %1514 = vmatpush.bf16.msra.mxu0 %v1248
    %1515 = vmatpush.bf16.msra.mxu0 %v1247
    %1516 = vmatpush.bf16.msra.mxu0 %v1246
    %1517 = vmatpush.bf16.msra.mxu0 %v1245
    %1518 = vmatpush.bf16.msra.mxu0 %v1244
    %1519 = vmatpush.bf16.msra.mxu0 %v1243
    %1520 = vmatpush.bf16.msra.mxu0 %v1242
    %1521 = vmatmul.bf16.gmra.mxu0 %v433
    %v1522 = vpop.f32.mrf.mxu0
    %v1523 = vadd.f32 %v1510, %v1522
    %v1524 = vpop.f32.mrf.mxu0
    %1525 = vdwg.mxu0
    %1526 = vmatpush.bf16.msra.mxu0 %v1257
    %1527 = vmatpush.bf16.msra.mxu0 %v1256
    %1528 = vmatpush.bf16.msra.mxu0 %v1255
    %1529 = vmatpush.bf16.msra.mxu0 %v1254
    %1530 = vmatpush.bf16.msra.mxu0 %v1253
    %1531 = vmatpush.bf16.msra.mxu0 %v1252
    %1532 = vmatpush.bf16.msra.mxu0 %v1251
    %1533 = vmatpush.bf16.msra.mxu0 %v1250
    %1534 = vmatmul.bf16.gmra.mxu0 %v434
    %v1535 = vpop.f32.mrf.mxu0
    %v1536 = vadd.f32 %v1523, %v1535
    %v1537 = vpop.f32.mrf.mxu0
    %1538 = vdwg.mxu0
    %1539 = vmatpush.bf16.msra.mxu0 %v1265
    %1540 = vmatpush.bf16.msra.mxu0 %v1264
    %1541 = vmatpush.bf16.msra.mxu0 %v1263
    %1542 = vmatpush.bf16.msra.mxu0 %v1262
    %1543 = vmatpush.bf16.msra.mxu0 %v1261
    %1544 = vmatpush.bf16.msra.mxu0 %v1260
    %1545 = vmatpush.bf16.msra.mxu0 %v1259
    %1546 = vmatpush.bf16.msra.mxu0 %v1258
    %1547 = vmatmul.bf16.gmra.mxu0 %v435
    %v1548 = vpop.f32.mrf.mxu0
    %v1549 = vadd.f32 %v1536, %v1548
    %v1550 = vpop.f32.mrf.mxu0
    %1551 = vdwg.mxu0
    %1552 = vmatpush.bf16.msra.mxu0 %v1273
    %1553 = vmatpush.bf16.msra.mxu0 %v1272
    %1554 = vmatpush.bf16.msra.mxu0 %v1271
    %1555 = vmatpush.bf16.msra.mxu0 %v1270
    %1556 = vmatpush.bf16.msra.mxu0 %v1269
    %1557 = vmatpush.bf16.msra.mxu0 %v1268
    %1558 = vmatpush.bf16.msra.mxu0 %v1267
    %1559 = vmatpush.bf16.msra.mxu0 %v1266
    %1560 = vmatmul.bf16.gmra.mxu0 %v436
    %v1561 = vpop.f32.mrf.mxu0
    %v1562 = vadd.f32 %v1549, %v1561
    %v1563 = vpop.f32.mrf.mxu0
    %1564 = vdwg.mxu0
    %1565 = vmatpush.bf16.msra.mxu0 %v1281
    %1566 = vmatpush.bf16.msra.mxu0 %v1280
    %1567 = vmatpush.bf16.msra.mxu0 %v1279
    %1568 = vmatpush.bf16.msra.mxu0 %v1278
    %1569 = vmatpush.bf16.msra.mxu0 %v1277
    %1570 = vmatpush.bf16.msra.mxu0 %v1276
    %1571 = vmatpush.bf16.msra.mxu0 %v1275
    %1572 = vmatpush.bf16.msra.mxu0 %v1274
    %1573 = vmatmul.bf16.gmra.mxu0 %v437
    %v1574 = vpop.f32.mrf.mxu0
    %v1575 = vadd.f32 %v1562, %v1574
    %v1576 = vpop.f32.mrf.mxu0
    %1577 = vdwg.mxu0
    %1578 = vmatpush.bf16.msra.mxu0 %v1289
    %1579 = vmatpush.bf16.msra.mxu0 %v1288
    %1580 = vmatpush.bf16.msra.mxu0 %v1287
    %1581 = vmatpush.bf16.msra.mxu0 %v1286
    %1582 = vmatpush.bf16.msra.mxu0 %v1285
    %1583 = vmatpush.bf16.msra.mxu0 %v1284
    %1584 = vmatpush.bf16.msra.mxu0 %v1283
    %1585 = vmatpush.bf16.msra.mxu0 %v1282
    %1586 = vmatmul.bf16.gmra.mxu0 %v438
    %v1587 = vpop.f32.mrf.mxu0
    %v1588 = vadd.f32 %v1575, %v1587
    %v1589 = vpop.f32.mrf.mxu0
    %1590 = vdwg.mxu0
    %1591 = vmatpush.bf16.msra.mxu0 %v1297
    %1592 = vmatpush.bf16.msra.mxu0 %v1296
    %1593 = vmatpush.bf16.msra.mxu0 %v1295
    %1594 = vmatpush.bf16.msra.mxu0 %v1294
    %1595 = vmatpush.bf16.msra.mxu0 %v1293
    %1596 = vmatpush.bf16.msra.mxu0 %v1292
    %1597 = vmatpush.bf16.msra.mxu0 %v1291
    %1598 = vmatpush.bf16.msra.mxu0 %v1290
    %1599 = vmatmul.bf16.gmra.mxu0 %v439
    %v1600 = vpop.f32.mrf.mxu0
    %v1601 = vadd.f32 %v1588, %v1600
    %v1602 = vpop.f32.mrf.mxu0
    %1603 = vdwg.mxu0
    %1604 = vmatpush.bf16.msra.mxu0 %v1305
    %1605 = vmatpush.bf16.msra.mxu0 %v1304
    %1606 = vmatpush.bf16.msra.mxu0 %v1303
    %1607 = vmatpush.bf16.msra.mxu0 %v1302
    %1608 = vmatpush.bf16.msra.mxu0 %v1301
    %1609 = vmatpush.bf16.msra.mxu0 %v1300
    %1610 = vmatpush.bf16.msra.mxu0 %v1299
    %1611 = vmatpush.bf16.msra.mxu0 %v1298
    %1612 = vmatmul.bf16.gmra.mxu0 %v440
    %v1613 = vpop.f32.mrf.mxu0
    %v1614 = vadd.f32 %v1601, %v1613
    %v1615 = vpop.f32.mrf.mxu0
    %1616 = vdwg.mxu0
    %1617 = vmatpush.bf16.msra.mxu0 %v1313
    %1618 = vmatpush.bf16.msra.mxu0 %v1312
    %1619 = vmatpush.bf16.msra.mxu0 %v1311
    %1620 = vmatpush.bf16.msra.mxu0 %v1310
    %1621 = vmatpush.bf16.msra.mxu0 %v1309
    %1622 = vmatpush.bf16.msra.mxu0 %v1308
    %1623 = vmatpush.bf16.msra.mxu0 %v1307
    %1624 = vmatpush.bf16.msra.mxu0 %v1306
    %1625 = vmatmul.bf16.gmra.mxu0 %v441
    %v1626 = vpop.f32.mrf.mxu0
    %v1627 = vadd.f32 %v1614, %v1626
    %v1628 = vpop.f32.mrf.mxu0
    %1629 = vdwg.mxu0
    %1630 = vmatpush.bf16.msra.mxu0 %v1321
    %1631 = vmatpush.bf16.msra.mxu0 %v1320
    %1632 = vmatpush.bf16.msra.mxu0 %v1319
    %1633 = vmatpush.bf16.msra.mxu0 %v1318
    %1634 = vmatpush.bf16.msra.mxu0 %v1317
    %1635 = vmatpush.bf16.msra.mxu0 %v1316
    %1636 = vmatpush.bf16.msra.mxu0 %v1315
    %1637 = vmatpush.bf16.msra.mxu0 %v1314
    %1638 = vmatmul.bf16.gmra.mxu0 %v442
    %v1639 = vpop.f32.mrf.mxu0
    %v1640 = vadd.f32 %v1627, %v1639
    %v1641 = vpop.f32.mrf.mxu0
    %1642 = vdwg.mxu0
    %1643 = vmatpush.bf16.msra.mxu0 %v1329
    %1644 = vmatpush.bf16.msra.mxu0 %v1328
    %1645 = vmatpush.bf16.msra.mxu0 %v1327
    %1646 = vmatpush.bf16.msra.mxu0 %v1326
    %1647 = vmatpush.bf16.msra.mxu0 %v1325
    %1648 = vmatpush.bf16.msra.mxu0 %v1324
    %1649 = vmatpush.bf16.msra.mxu0 %v1323
    %1650 = vmatpush.bf16.msra.mxu0 %v1322
    %1651 = vmatmul.bf16.gmra.mxu0 %v443
    %v1652 = vpop.f32.mrf.mxu0
    %v1653 = vadd.f32 %v1640, %v1652
    %v1654 = vpop.f32.mrf.mxu0
    %1655 = vdwg.mxu0
    %1656 = vmatpush.bf16.msra.mxu0 %v1337
    %1657 = vmatpush.bf16.msra.mxu0 %v1336
    %1658 = vmatpush.bf16.msra.mxu0 %v1335
    %1659 = vmatpush.bf16.msra.mxu0 %v1334
    %1660 = vmatpush.bf16.msra.mxu0 %v1333
    %1661 = vmatpush.bf16.msra.mxu0 %v1332
    %1662 = vmatpush.bf16.msra.mxu0 %v1331
    %1663 = vmatpush.bf16.msra.mxu0 %v1330
    %1664 = vmatmul.bf16.gmra.mxu0 %v444
    %v1665 = vpop.f32.mrf.mxu0
    %v1666 = vadd.f32 %v1653, %v1665
    %v1667 = vpop.f32.mrf.mxu0
    %1668 = vdwg.mxu0
    %1669 = vmatpush.bf16.msra.mxu0 %v1345
    %1670 = vmatpush.bf16.msra.mxu0 %v1344
    %1671 = vmatpush.bf16.msra.mxu0 %v1343
    %1672 = vmatpush.bf16.msra.mxu0 %v1342
    %1673 = vmatpush.bf16.msra.mxu0 %v1341
    %1674 = vmatpush.bf16.msra.mxu0 %v1340
    %1675 = vmatpush.bf16.msra.mxu0 %v1339
    %1676 = vmatpush.bf16.msra.mxu0 %v1338
    %1677 = vmatmul.bf16.gmra.mxu0 %v445
    %v1678 = vpop.f32.mrf.mxu0
    %v1679 = vadd.f32 %v1666, %v1678
    %v1680 = vpop.f32.mrf.mxu0
    %1681 = vdwg.mxu0
    %1682 = vst [vmem:[#allocation10] sm:$0x3] %v1679
    // Predicated region
    $region38: #{tpu_custom_call.1} parent=1 // pred_check
      _
    $region39: #{tpu_custom_call.1} parent=1 // pred_check_branch
      %1684 = sbr.rel (0) target = $region41
    $region40: #{tpu_custom_call.1} parent=1 // pred_region
      %1686 = vsyncadd [#allocation4], 0
      %s1688 = sshll.u32 [#allocation10], 4
      %s1689 = int_to_ptr.vmem [resolvable:$true] %s1688
      %s1690 = sshll.u32 %s5, 4
      %s1691 = int_to_ptr.hbm [resolvable:$true] %s1690
      %1693 = dma.vmem_to_hbm [thread:$0]  %s1689, 32, %s1691, [#allocation4]
    $region41: #{tpu_custom_call.1} parent=1 // pred_fallthru
      _
    // Predicated region
    $region42: #{tpu_custom_call.1} parent=1 // pred_check
      _
    $region43: #{tpu_custom_call.1} parent=1 // pred_check_branch
      %1695 = sbr.rel (0) target = $region45
    $region44: #{tpu_custom_call.1} parent=1 // pred_region
      %1697 = dma.done [#allocation4], 32
    $region45: #{tpu_custom_call.1} parent=1 // pred_fallthru
      _
    %1698 = vsyncpa [#allocation3], 1
    %1699 = vsyncpa [#allocation6], 1
    %1700 = vsyncpa [#allocation9], 1
    %1701 = vsyncpa [#allocation4], 1

</llo_original>
